<compile_context>
chip_gen: v5e
topology: v5e:2x2
jax: 0.10.0
libtpu: 0.0.40
codegen_flags: <defaults>
</compile_context>

<pallas_src>
import functools

import jax
import jax.numpy as jnp
import numpy as np
from jax.experimental import pallas as pl
from jax.experimental.pallas import tpu as pltpu

LN_EPS = 1e-5   # torch.nn.LayerNorm default
BN_EPS = 1e-5   # torch.nn.BatchNorm1d default
KV_CHUNK = 512  # per-head score tile is (T, KV_CHUNK) instead of (T, T)


# ---------------------------------------------------------------------------
# Generation-aware budgets (v5e/v6e: 128 MiB physical VMEM, v7x: 64 MiB).
# ---------------------------------------------------------------------------
def _vmem_capacity_bytes():
    try:
        return int(pltpu.get_tpu_info().vmem_capacity_bytes)
    except Exception:
        return 64 * 1024 * 1024          # conservative (v7x-sized) fallback


_VMEM_CAP = _vmem_capacity_bytes()
VMEM_LIMIT = min((_VMEM_CAP * 3) // 4, 100 * 1024 * 1024)   # ~48 MiB v7x, ~96 MiB v5e/v6e
ROW_TILE_CAP = 1024 if _VMEM_CAP >= 96 * 1024 * 1024 else 512


# ---------------------------------------------------------------------------
# pl.Buffered(1) support probe: single-buffer grid-invariant weights when the
# installed Pallas honors pipeline_mode, otherwise fall back silently.
# ---------------------------------------------------------------------------
_BUFFERED_OK = None


def _buffered_weights_supported():
    global _BUFFERED_OK
    if _BUFFERED_OK is None:
        try:
            def _probe(a_ref, o_ref):
                o_ref[...] = a_ref[...] + 1.0

            out = pl.pallas_call(
                _probe,
                grid=(2,),
                in_specs=[pl.BlockSpec((8, 128), lambda i: (0, 0),
                                       pipeline_mode=pl.Buffered(1))],
                out_specs=pl.BlockSpec((8, 128), lambda i: (0, 0)),
                out_shape=jax.ShapeDtypeStruct((8, 128), jnp.float32),
            )(jnp.zeros((8, 128), jnp.float32))
            jax.block_until_ready(out)
            _BUFFERED_OK = True
        except Exception:
            _BUFFERED_OK = False
    return _BUFFERED_OK


def _const_spec(arr):
    """BlockSpec for a grid-invariant (weight/bias) operand: VMEM-resident via a
    constant index_map, single-buffered when supported (halves weight VMEM)."""
    idx = lambda *_, nd=arr.ndim: (0,) * nd
    if _buffered_weights_supported():
        return pl.BlockSpec(arr.shape, idx, pipeline_mode=pl.Buffered(1))
    return pl.BlockSpec(arr.shape, idx)


def _layernorm(x, gamma, beta):
    mu = jnp.mean(x, axis=-1, keepdims=True)
    var = jnp.mean((x - mu) ** 2, axis=-1, keepdims=True)
    return (x - mu) * jax.lax.rsqrt(var + LN_EPS) * gamma + beta


def _row_tile(n_rows, cap):
    """Row tile for the flattened (rows, E) FF slab: full slab if small, else a
    multiple-of-8 tile; the grid uses cdiv so a ragged tail block is handled by
    Pallas partial-block masking (rows are independent)."""
    if n_rows <= cap:
        return n_rows
    return max(8, (cap // 8) * 8)


# ---------------------------------------------------------------------------
# Kernel 1: fused residual feed-forward  out = x + 0.5 * Lin2(ReLU(Lin1(LN(x))))
# optionally followed by the block's final LayerNorm.  Grid over row tiles of
# the flattened (N*T, E) slab; weights stay VMEM-resident.
# ---------------------------------------------------------------------------
def _ff_residual_kernel(*refs, with_final_ln):
    if with_final_ln:
        (x_ref, g_ref, b_ref, w1_ref, b1_ref, w2_ref, b2_ref,
         fg_ref, fb_ref, o_ref) = refs
    else:
        x_ref, g_ref, b_ref, w1_ref, b1_ref, w2_ref, b2_ref, o_ref = refs

    x = x_ref[...]                                            # (tR, E) f32
    xn = _layernorm(x, g_ref[...], b_ref[...])
    h = jnp.maximum(
        jnp.dot(xn.astype(jnp.bfloat16), w1_ref[...],
                preferred_element_type=jnp.float32) + b1_ref[...], 0.0)
    y = jnp.dot(h.astype(jnp.bfloat16), w2_ref[...],
                preferred_element_type=jnp.float32) + b2_ref[...]
    out = x + 0.5 * y
    if with_final_ln:
        out = _layernorm(out, fg_ref[...], fb_ref[...])
    o_ref[...] = out.astype(o_ref.dtype)


def ff_residual(x2d, params, final_ln=None):
    R, E = x2d.shape
    tr = _row_tile(R, ROW_TILE_CAP)
    with_final = final_ln is not None
    args = list(params) + (list(final_ln) if with_final else [])

    kern = functools.partial(_ff_residual_kernel, with_final_ln=with_final)
    in_specs = [pl.BlockSpec((tr, E), lambda i: (i, 0))]
    in_specs += [_const_spec(a) for a in args]
    return pl.pallas_call(
        kern,
        grid=(pl.cdiv(R, tr),),
        in_specs=in_specs,
        out_specs=pl.BlockSpec((tr, E), lambda i: (i, 0)),
        out_shape=jax.ShapeDtypeStruct((R, E), x2d.dtype),
        compiler_params=pltpu.CompilerParams(
            dimension_semantics=("parallel",),
            vmem_limit_bytes=VMEM_LIMIT),
    )(x2d, *args)


# ---------------------------------------------------------------------------
# Kernel 2 (fused): multi-head self-attention + residual, then the conformer
# conv module + residual, in ONE pallas_call gridded over batch.  The attention
# residual stays in a VMEM scratch and never round-trips through HBM.
# ---------------------------------------------------------------------------
def _head_attention(q, k, v):
    """Online-softmax attention for one head (q pre-scaled by 1/sqrt(dh)).
    Never materializes a (T, T) score tile — peak is (T, KV_CHUNK)."""
    T, dh = q.shape
    S = k.shape[0]
    m = jnp.full((T, 1), -jnp.inf, jnp.float32)
    l = jnp.zeros((T, 1), jnp.float32)
    acc = jnp.zeros((T, dh), jnp.float32)
    for start in range(0, S, KV_CHUNK):                       # static chunk loop
        kc = k[start:start + KV_CHUNK]
        vc = v[start:start + KV_CHUNK]
        s = jax.lax.dot_general(q, kc, (((1,), (1,)), ((), ())),
                                preferred_element_type=jnp.float32)   # (T, Sc)
        m_new = jnp.maximum(m, jnp.max(s, axis=-1, keepdims=True))
        alpha = jnp.exp(m - m_new)
        p = jnp.exp(s - m_new)
        l = alpha * l + jnp.sum(p, axis=-1, keepdims=True)
        acc = alpha * acc + jnp.dot(p.astype(jnp.bfloat16), vc,
                                    preferred_element_type=jnp.float32)
        m = m_new
    return acc * pl.reciprocal(l, approx=True)


def _mha_conv_kernel(x_ref, wqkv_ref, bqkv_ref, woh_ref, bo_ref,
                     lng_ref, lnb_ref, w1_ref, b1_ref, bns_ref, bnh_ref,
                     w2_ref, b2_ref, o_ref, y_ref, pad_ref, acc_ref,
                     *, nhead, kernel_size):
    x = x_ref[...]                                            # (T, E) f32
    T, E = x.shape
    dh = E // nhead
    K = kernel_size
    P = (K - 1) // 2
    rows = pad_ref.shape[0]

    # ---- self-attention + residual (kept in VMEM, not written to HBM) ----
    qkv = jnp.dot(x.astype(jnp.bfloat16), wqkv_ref[...],
                  preferred_element_type=jnp.float32) + bqkv_ref[...]   # (T, 3E)
    qkv_bf = qkv.astype(jnp.bfloat16)                         # one cast before head loop

    attn = jnp.zeros((T, E), jnp.float32)
    for h in range(nhead):                                    # static unroll over heads
        q = qkv_bf[:, h * dh:(h + 1) * dh]                    # q pre-scaled by 1/sqrt(dh)
        k = qkv_bf[:, E + h * dh:E + (h + 1) * dh]
        v = qkv_bf[:, 2 * E + h * dh:2 * E + (h + 1) * dh]
        ctx = _head_attention(q, k, v)                        # (T, dh) f32
        # accumulate the output projection per head (no lane-interleaving concat)
        attn = attn + jnp.dot(ctx.astype(jnp.bfloat16), woh_ref[h],
                              preferred_element_type=jnp.float32)
    y = x + attn + bo_ref[...]
    y_ref[...] = y                                            # attention residual (VMEM)

    # ---- conv module + residual, fed straight from VMEM ----
    # Halos are re-zeroed every step: a once-only program_id==0 guard is unsafe
    # when the batch axis is core-sharded (second core never sees step 0).
    pad_ref[pl.ds(0, P), :] = jnp.zeros((P, E), jnp.float32)
    bot = rows - P - T
    pad_ref[pl.ds(P + T, bot), :] = jnp.zeros((bot, E), jnp.float32)
    pad_ref[pl.ds(P, T), :] = _layernorm(y, lng_ref[...], lnb_ref[...])

    acc_ref[...] = jnp.broadcast_to(b1_ref[...], (T, 2 * E))  # init with conv bias
    for k in range(K):                                        # static taps; ref accumulation
        # TODO(synk): group taps by (k mod 8) + pltpu.roll for sublane-aligned loads.
        xk = pad_ref[pl.ds(k, T), :].astype(jnp.bfloat16)
        acc_ref[...] += jnp.dot(xk, w1_ref[k], preferred_element_type=jnp.float32)

    acc = acc_ref[...]
    glu = acc[:, :E] * jax.nn.sigmoid(acc[:, E:])             # GLU over channels
    bn = glu * bns_ref[...] + bnh_ref[...]                    # BN pre-folded to scale/shift
    r = jnp.maximum(bn, 0.0).astype(jnp.bfloat16)
    y2 = jnp.dot(r, w2_ref[...], preferred_element_type=jnp.float32) + b2_ref[...]
    o_ref[...] = (y_ref[...] + y2).astype(o_ref.dtype)


def mha_conv_residual(x_nte, params, nhead, kernel_size):
    N, T, E = x_nte.shape
    K = kernel_size
    rows = -(-(T + K - 1) // 8) * 8                           # sublane-aligned scratch rows
    kern = functools.partial(_mha_conv_kernel, nhead=nhead, kernel_size=K)
    in_specs = [pl.BlockSpec((None, T, E), lambda b: (b, 0, 0))]
    in_specs += [_const_spec(p) for p in params]
    return pl.pallas_call(
        kern,
        grid=(N,),
        in_specs=in_specs,
        out_specs=pl.BlockSpec((None, T, E), lambda b: (b, 0, 0)),
        out_shape=jax.ShapeDtypeStruct((N, T, E), x_nte.dtype),
        scratch_shapes=[pltpu.VMEM((T, E), jnp.float32),       # attention residual
                        pltpu.VMEM((rows, E), jnp.float32),    # zero-haloed conv input
                        pltpu.VMEM((T, 2 * E), jnp.float32)],  # conv tap accumulator
        compiler_params=pltpu.CompilerParams(
            dimension_semantics=("parallel",),
            vmem_limit_bytes=VMEM_LIMIT),
    )(x_nte, *params)


# ---------------------------------------------------------------------------
# Full ConformerBlock forward.
# ---------------------------------------------------------------------------
def conformer_block_forward_nte(x_nte, params, nhead, conv_kernel_size):
    """Batch-first (N, T, E) layout — fully transpose-free; a stack of blocks
    should call this directly so the per-block boundary transposes cancel."""
    N, T, E = x_nte.shape
    x2d = ff_residual(x_nte.reshape(N * T, E), params["ff1"])          # x + 0.5*ff1(x)
    x_nte = mha_conv_residual(x2d.reshape(N, T, E), params["mha_conv"],
                              nhead, conv_kernel_size)                 # (+mha)(+conv)
    x2d = ff_residual(x_nte.reshape(N * T, E), params["ff2"],
                      final_ln=params["final"])                        # x + 0.5*ff2(x) ; final LN fused
    return x2d.reshape(N, T, E)


def conformer_block_forward(x, params, nhead, conv_kernel_size):
    """PyTorch-layout (T, N, E) entry point."""
    x_nte = jnp.transpose(x, (1, 0, 2))
    y_nte = conformer_block_forward_nte(x_nte, params, nhead, conv_kernel_size)
    return jnp.transpose(y_nte, (1, 0, 2))


# ---------------------------------------------------------------------------
# Deterministic synthetic parameters (PyTorch layouts) + Pallas-layout prep.
# ---------------------------------------------------------------------------
def init_raw_params(key, d_model, nhead, dim_ff, conv_k):
    E, F, K = d_model, dim_ff, conv_k
    keys = iter(jax.random.split(key, 32))

    def nrm(shape, scale=0.05):
        return (scale * jax.random.normal(next(keys), shape)).astype(jnp.float32)

    def ff_params():
        return dict(ln_g=nrm((E,), 0.1) + 1.0, ln_b=nrm((E,), 0.1),
                    w1=nrm((F, E)), b1=nrm((F,)),
                    w2=nrm((E, F)), b2=nrm((E,)))

    p = {}
    p["ff1"] = ff_params()
    p["mha"] = dict(in_w=nrm((3 * E, E)), in_b=nrm((3 * E,)),
                    out_w=nrm((E, E)), out_b=nrm((E,)))
    p["conv"] = dict(ln_g=nrm((E,), 0.1) + 1.0, ln_b=nrm((E,), 0.1),
                     w1=nrm((2 * E, E, K)), b1=nrm((2 * E,)),
                     bn_g=nrm((E,), 0.1) + 1.0, bn_b=nrm((E,), 0.1),
                     bn_mean=jnp.zeros((E,), jnp.float32),
                     bn_var=jnp.ones((E,), jnp.float32),
                     w2=nrm((E, E, 1)), b2=nrm((E,)))
    p["ff2"] = ff_params()
    p["final"] = dict(ln_g=nrm((E,), 0.1) + 1.0, ln_b=nrm((E,), 0.1))
    return p


def prepare_pallas_params(raw, d_model, nhead):
    E, H = d_model, nhead
    Dh = E // H
    bf16 = jnp.bfloat16

    def prep_ff(q):
        return (q["ln_g"].reshape(1, E), q["ln_b"].reshape(1, E),
                q["w1"].T.astype(bf16), q["b1"].reshape(1, -1),
                q["w2"].T.astype(bf16), q["b2"].reshape(1, E))

    m = raw["mha"]
    scale = 1.0 / float(np.sqrt(Dh))
    wqkv = m["in_w"].T                              # (E, 3E), columns = [q | k | v]
    wqkv = wqkv.at[:, :E].multiply(scale)           # fold 1/sqrt(Dh) into Wq
    bqkv = m["in_b"].reshape(1, 3 * E)
    bqkv = bqkv.at[:, :E].multiply(scale)           # ... and into bq
    woh = m["out_w"].T.reshape(H, Dh, E)            # per-head rows of out projection

    c = raw["conv"]
    bn_scale = c["bn_g"] / jnp.sqrt(c["bn_var"] + BN_EPS)     # BN folded (eval mode)
    bn_shift = c["bn_b"] - c["bn_mean"] * bn_scale

    mha_conv = (
        wqkv.astype(bf16), bqkv.astype(jnp.float32),
        woh.astype(bf16), m["out_b"].reshape(1, E),
        c["ln_g"].reshape(1, E), c["ln_b"].reshape(1, E),
        c["w1"].transpose(2, 1, 0).astype(bf16),              # (K, E_in, 2E_out): [a | gate]
        c["b1"].reshape(1, 2 * E),
        bn_scale.reshape(1, E), bn_shift.reshape(1, E),
        c["w2"][:, :, 0].T.astype(bf16), c["b2"].reshape(1, E))

    f = raw["final"]
    return dict(ff1=prep_ff(raw["ff1"]), mha_conv=mha_conv,
                ff2=prep_ff(raw["ff2"]),
                final=(f["ln_g"].reshape(1, E), f["ln_b"].reshape(1, E)))


# ---------------------------------------------------------------------------
# Pure-JAX reference (PyTorch semantics, eval mode, f32) for verification.
# ---------------------------------------------------------------------------
def reference_forward(x, raw, nhead, conv_k):
    T, N, E = x.shape
    H, Dh = nhead, E // nhead

    def ln(v, g, b):
        mu = v.mean(-1, keepdims=True)
        var = ((v - mu) ** 2).mean(-1, keepdims=True)
        return (v - mu) / jnp.sqrt(var + LN_EPS) * g + b

    def ff(v, q):
        h = jax.nn.relu(ln(v, q["ln_g"], q["ln_b"]) @ q["w1"].T + q["b1"])
        return h @ q["w2"].T + q["b2"]

    x = x + 0.5 * ff(x, raw["ff1"])

    m = raw["mha"]
    qkv = x @ m["in_w"].T + m["in_b"]
    q, k, v = jnp.split(qkv, 3, axis=-1)

    def heads(t):
        return t.reshape(T, N, H, Dh).transpose(1, 2, 0, 3)     # (N,H,T,Dh)

    qh, kh, vh = heads(q), heads(k), heads(v)
    s = jnp.einsum("nhtd,nhsd->nhts", qh, kh) / jnp.sqrt(Dh)
    p = jax.nn.softmax(s, axis=-1)
    oh = jnp.einsum("nhts,nhsd->nhtd", p, vh)
    attn = oh.transpose(2, 0, 1, 3).reshape(T, N, E) @ m["out_w"].T + m["out_b"]
    x = x + attn

    c = raw["conv"]
    ci = x.transpose(1, 2, 0)                                   # (N, E, T)
    cn = ln(ci.transpose(0, 2, 1), c["ln_g"], c["ln_b"]).transpose(0, 2, 1)
    P = (conv_k - 1) // 2
    y = jax.lax.conv_general_dilated(
        cn, c["w1"], window_strides=(1,), padding=[(P, P)],
        dimension_numbers=("NCH", "OIH", "NCH")) + c["b1"][None, :, None]
    a, gate = jnp.split(y, 2, axis=1)
    glu = a * jax.nn.sigmoid(gate)
    bn = ((glu - c["bn_mean"][None, :, None]) /
          jnp.sqrt(c["bn_var"][None, :, None] + BN_EPS) *
          c["bn_g"][None, :, None] + c["bn_b"][None, :, None])
    r = jax.nn.relu(bn)
    y2 = jax.lax.conv_general_dilated(
        r, c["w2"], window_strides=(1,), padding=[(0, 0)],
        dimension_numbers=("NCH", "OIH", "NCH")) + c["b2"][None, :, None]
    x = x + y2.transpose(2, 0, 1)

    x = x + 0.5 * ff(x, raw["ff2"])
    return ln(x, raw["final"]["ln_g"], raw["final"]["ln_b"])


if __name__ == "__main__":
    T, N, D_MODEL, NHEAD, DIM_FF, CONV_K = 8, 2, 32, 4, 64, 31

    key = jax.random.PRNGKey(0)
    kp, kx = jax.random.split(key)
    raw = init_raw_params(kp, D_MODEL, NHEAD, DIM_FF, CONV_K)
    params = prepare_pallas_params(raw, D_MODEL, NHEAD)
    x = jax.random.normal(kx, (T, N, D_MODEL), jnp.float32)

    out = conformer_block_forward(x, params, NHEAD, CONV_K)
    out = jax.block_until_ready(out)

    ref = reference_forward(x, raw, NHEAD, CONV_K)
    # bf16 matmul operands (f32 accumulation) -> looser tolerance than pure f32.
    np.testing.assert_allclose(np.asarray(out), np.asarray(ref), rtol=2e-2, atol=3e-2)
    print("KERNEL_OK")
</pallas_src>

<mosaic_0001>
module attributes {stable_mosaic.version = 11 : i64} {
  func.func @_probe(%arg0: i32, %arg1: memref<8x128xf32, #tpu.memory_space<vmem>>, %arg2: memref<8x128xf32, #tpu.memory_space<vmem>>) attributes {dimension_semantics = [#tpu.dimension_semantics<arbitrary>], iteration_bounds = array<i64: 2>, scalar_prefetch = 0 : i64, scratch_operands = 0 : i64, tpu.core_type = #tpu.core_type<tc>, window_params = [{pipeline_mode = #tpu.pipeline_mode<synchronous>, transform_indices = @transform_0, window_bounds = array<i64: 8, 128>}, {pipeline_mode = #tpu.pipeline_mode<synchronous>, transform_indices = @transform_1, window_bounds = array<i64: 8, 128>}]} {
    %c0 = arith.constant 0 : index
    %c0_0 = arith.constant 0 : index
    %0 = vector.load %arg1[%c0, %c0_0] : memref<8x128xf32, #tpu.memory_space<vmem>>, vector<8x128xf32>
    %cst = arith.constant 1.000000e+00 : f32
    %1 = vector.broadcast %cst : f32 to vector<8x128xf32>
    %2 = arith.addf %0, %1 : vector<8x128xf32>
    %c0_1 = arith.constant 0 : index
    %c0_2 = arith.constant 0 : index
    %3 = vector.load %arg2[%c0_1, %c0_2] : memref<8x128xf32, #tpu.memory_space<vmem>>, vector<8x128xf32>
    tpu.vector_store %arg2[%c0_1, %c0_2], %2 {strides = array<i32>} : memref<8x128xf32, #tpu.memory_space<vmem>>, vector<8x128xf32>,
    return
  }
  func.func @transform_0(%arg0: i32) -> (i32, i32) {
    %c0_i32 = arith.constant 0 : i32
    %c0_i32_0 = arith.constant 0 : i32
    %c0_i32_1 = arith.constant 0 : i32
    return %c0_i32, %c0_i32_0 : i32, i32
  }
  func.func @transform_1(%arg0: i32) -> (i32, i32) {
    %c0_i32 = arith.constant 0 : i32
    %c0_i32_0 = arith.constant 0 : i32
    %c0_i32_1 = arith.constant 0 : i32
    return %c0_i32, %c0_i32_0 : i32, i32
  }
}

module attributes {stable_mosaic.version = 11 : i64} {
  func.func @_ff_residual_kernel(%arg0: i32, %arg1: memref<16x32xf32, #tpu.memory_space<vmem>>, %arg2: memref<1x32xf32, #tpu.memory_space<vmem>>, %arg3: memref<1x32xf32, #tpu.memory_space<vmem>>, %arg4: memref<32x64xbf16, #tpu.memory_space<vmem>>, %arg5: memref<1x64xf32, #tpu.memory_space<vmem>>, %arg6: memref<64x32xbf16, #tpu.memory_space<vmem>>, %arg7: memref<1x32xf32, #tpu.memory_space<vmem>>, %arg8: memref<16x32xf32, #tpu.memory_space<vmem>>) attributes {dimension_semantics = [#tpu.dimension_semantics<parallel>], iteration_bounds = array<i64: 1>, scalar_prefetch = 0 : i64, scratch_operands = 0 : i64, tpu.core_type = #tpu.core_type<tc>, window_params = [{transform_indices = @transform_0, window_bounds = array<i64: 16, 32>}, {pipeline_mode = #tpu.pipeline_mode<synchronous>, transform_indices = @transform_1, window_bounds = array<i64: 1, 32>}, {pipeline_mode = #tpu.pipeline_mode<synchronous>, transform_indices = @transform_2, window_bounds = array<i64: 1, 32>}, {pipeline_mode = #tpu.pipeline_mode<synchronous>, transform_indices = @transform_3, window_bounds = array<i64: 32, 64>}, {pipeline_mode = #tpu.pipeline_mode<synchronous>, transform_indices = @transform_4, window_bounds = array<i64: 1, 64>}, {pipeline_mode = #tpu.pipeline_mode<synchronous>, transform_indices = @transform_5, window_bounds = array<i64: 64, 32>}, {pipeline_mode = #tpu.pipeline_mode<synchronous>, transform_indices = @transform_6, window_bounds = array<i64: 1, 32>}, {transform_indices = @transform_7, window_bounds = array<i64: 16, 32>}]} {
    %c0 = arith.constant 0 : index
    %c0_0 = arith.constant 0 : index
    %0 = vector.load %arg1[%c0, %c0_0] : memref<16x32xf32, #tpu.memory_space<vmem>>, vector<16x32xf32>
    %c0_1 = arith.constant 0 : index
    %c0_2 = arith.constant 0 : index
    %1 = vector.load %arg2[%c0_1, %c0_2] : memref<1x32xf32, #tpu.memory_space<vmem>>, vector<1x32xf32>
    %c0_3 = arith.constant 0 : index
    %c0_4 = arith.constant 0 : index
    %2 = vector.load %arg3[%c0_3, %c0_4] : memref<1x32xf32, #tpu.memory_space<vmem>>, vector<1x32xf32>
    %cst = arith.constant dense<0.000000e+00> : vector<16xf32>
    %3 = vector.multi_reduction <add>, %0, %cst [1] : vector<16x32xf32> to vector<16xf32>
    %4 = vector.shape_cast %3 : vector<16xf32> to vector<16x1xf32>
    %cst_5 = arith.constant 3.200000e+01 : f32
    %5 = vector.broadcast %cst_5 : f32 to vector<16x1xf32>
    %6 = arith.divf %4, %5 : vector<16x1xf32>
    %7 = vector.broadcast %6 : vector<16x1xf32> to vector<16x32xf32>
    %8 = arith.subf %0, %7 : vector<16x32xf32>
    %9 = arith.mulf %8, %8 : vector<16x32xf32>
    %cst_6 = arith.constant dense<0.000000e+00> : vector<16xf32>
    %10 = vector.multi_reduction <add>, %9, %cst_6 [1] : vector<16x32xf32> to vector<16xf32>
    %11 = vector.shape_cast %10 : vector<16xf32> to vector<16x1xf32>
    %cst_7 = arith.constant 3.200000e+01 : f32
    %12 = vector.broadcast %cst_7 : f32 to vector<16x1xf32>
    %13 = arith.divf %11, %12 : vector<16x1xf32>
    %14 = vector.broadcast %6 : vector<16x1xf32> to vector<16x32xf32>
    %15 = arith.subf %0, %14 : vector<16x32xf32>
    %cst_8 = arith.constant 9.99999974E-6 : f32
    %16 = vector.broadcast %cst_8 : f32 to vector<16x1xf32>
    %17 = arith.addf %13, %16 : vector<16x1xf32>
    %18 = math.rsqrt %17 : vector<16x1xf32>
    %19 = vector.broadcast %18 : vector<16x1xf32> to vector<16x32xf32>
    %20 = arith.mulf %15, %19 : vector<16x32xf32>
    %21 = vector.broadcast %1 : vector<1x32xf32> to vector<16x32xf32>
    %22 = arith.mulf %20, %21 : vector<16x32xf32>
    %23 = vector.broadcast %2 : vector<1x32xf32> to vector<16x32xf32>
    %24 = arith.addf %22, %23 : vector<16x32xf32>
    %25 = arith.truncf %24 : vector<16x32xf32> to vector<16x32xbf16>
    %c0_9 = arith.constant 0 : index
    %c0_10 = arith.constant 0 : index
    %26 = vector.load %arg4[%c0_9, %c0_10] : memref<32x64xbf16, #tpu.memory_space<vmem>>, vector<32x64xbf16>
    %cst_11 = arith.constant dense<0.000000e+00> : vector<16x64xf32>
    %27 = tpu.matmul %25, %26, %cst_11 {dimension_numbers = #tpu.dot_dimension_numbers<[1], [0], [0], [1], [0, 0, 1, 1], [], []>} : vector<16x32xbf16>, vector<32x64xbf16>, vector<16x64xf32> -> vector<16x64xf32>
    %c0_12 = arith.constant 0 : index
    %c0_13 = arith.constant 0 : index
    %28 = vector.load %arg5[%c0_12, %c0_13] : memref<1x64xf32, #tpu.memory_space<vmem>>, vector<1x64xf32>
    %29 = vector.broadcast %28 : vector<1x64xf32> to vector<16x64xf32>
    %30 = arith.addf %27, %29 : vector<16x64xf32>
    %cst_14 = arith.constant 0.000000e+00 : f32
    %31 = vector.broadcast %cst_14 : f32 to vector<16x64xf32>
    %32 = arith.maximumf %30, %31 : vector<16x64xf32>
    %33 = arith.truncf %32 : vector<16x64xf32> to vector<16x64xbf16>
    %c0_15 = arith.constant 0 : index
    %c0_16 = arith.constant 0 : index
    %34 = vector.load %arg6[%c0_15, %c0_16] : memref<64x32xbf16, #tpu.memory_space<vmem>>, vector<64x32xbf16>
    %cst_17 = arith.constant dense<0.000000e+00> : vector<16x32xf32>
    %35 = tpu.matmul %33, %34, %cst_17 {dimension_numbers = #tpu.dot_dimension_numbers<[1], [0], [0], [1], [0, 0, 1, 1], [], []>} : vector<16x64xbf16>, vector<64x32xbf16>, vector<16x32xf32> -> vector<16x32xf32>
    %c0_18 = arith.constant 0 : index
    %c0_19 = arith.constant 0 : index
    %36 = vector.load %arg7[%c0_18, %c0_19] : memref<1x32xf32, #tpu.memory_space<vmem>>, vector<1x32xf32>
    %37 = vector.broadcast %36 : vector<1x32xf32> to vector<16x32xf32>
    %38 = arith.addf %35, %37 : vector<16x32xf32>
    %cst_20 = arith.constant 5.000000e-01 : f32
    %39 = vector.broadcast %cst_20 : f32 to vector<16x32xf32>
    %40 = arith.mulf %39, %38 : vector<16x32xf32>
    %41 = arith.addf %0, %40 : vector<16x32xf32>
    %c0_21 = arith.constant 0 : index
    %c0_22 = arith.constant 0 : index
    %42 = vector.load %arg8[%c0_21, %c0_22] : memref<16x32xf32, #tpu.memory_space<vmem>>, vector<16x32xf32>
    tpu.vector_store %arg8[%c0_21, %c0_22], %41 {strides = array<i32>} : memref<16x32xf32, #tpu.memory_space<vmem>>, vector<16x32xf32>,
    return
  }
  func.func @transform_0(%arg0: i32) -> (i32, i32) {
    %c0_i32 = arith.constant 0 : i32
    %c0_i32_0 = arith.constant 0 : i32
    return %arg0, %c0_i32 : i32, i32
  }
  func.func @transform_1(%arg0: i32) -> (i32, i32) {
    %c0_i32 = arith.constant 0 : i32
    %c0_i32_0 = arith.constant 0 : i32
    %c0_i32_1 = arith.constant 0 : i32
    return %c0_i32, %c0_i32_0 : i32, i32
  }
  func.func @transform_2(%arg0: i32) -> (i32, i32) {
    %c0_i32 = arith.constant 0 : i32
    %c0_i32_0 = arith.constant 0 : i32
    %c0_i32_1 = arith.constant 0 : i32
    return %c0_i32, %c0_i32_0 : i32, i32
  }
  func.func @transform_3(%arg0: i32) -> (i32, i32) {
    %c0_i32 = arith.constant 0 : i32
    %c0_i32_0 = arith.constant 0 : i32
    %c0_i32_1 = arith.constant 0 : i32
    return %c0_i32, %c0_i32_0 : i32, i32
  }
  func.func @transform_4(%arg0: i32) -> (i32, i32) {
    %c0_i32 = arith.constant 0 : i32
    %c0_i32_0 = arith.constant 0 : i32
    %c0_i32_1 = arith.constant 0 : i32
    return %c0_i32, %c0_i32_0 : i32, i32
  }
  func.func @transform_5(%arg0: i32) -> (i32, i32) {
    %c0_i32 = arith.constant 0 : i32
    %c0_i32_0 = arith.constant 0 : i32
    %c0_i32_1 = arith.constant 0 : i32
    return %c0_i32, %c0_i32_0 : i32, i32
  }
  func.func @transform_6(%arg0: i32) -> (i32, i32) {
    %c0_i32 = arith.constant 0 : i32
    %c0_i32_0 = arith.constant 0 : i32
    %c0_i32_1 = arith.constant 0 : i32
    return %c0_i32, %c0_i32_0 : i32, i32
  }
  func.func @transform_7(%arg0: i32) -> (i32, i32) {
    %c0_i32 = arith.constant 0 : i32
    %c0_i32_0 = arith.constant 0 : i32
    return %arg0, %c0_i32 : i32, i32
  }
}

</mosaic_0001>

<llo_original>
// kernel: tpu_custom_call.1
$region0: #{tpu_custom_call.1}
  #allocation0 [shape = 'u32[]', space=smem, size = 0x4, offset = 0x4, fixed_abs, tag = 'smem constant byte address 0x4 - core index']
  #allocation1 [shape = 'u32[72,128]{1,0:T(1,128)}', space=vmem, size = 0x9000, scoped, tag = 'internal scratch']
  %s0 = inlined_call_operand.hbm [shape: f32[8,128], index: 0, kind: input, shape index: {}]
  %s1 = inlined_call_operand.hbm [shape: f32[8,128], index: 1, kind: output, shape index: {}]
  %s2 = sld [smem:[#allocation0]]
  $region41: #{tpu_custom_call.1} parent=0
    _
  %s4 = ssub.s32 1, %s2
  %s5 = scalar_select 0, %s4, %s2
  $region1: #{tpu_custom_call.1} parent=0
    #allocation2 [shape = 'u8[4096]{0}', space=vmem, size = 0x1000, scoped, tag = 'input window, operand 0, single buffered']
    #allocation3 [shape = 's32[2]{0}', space=sflag, size = 0x8, scoped, tag = 'scoped memory for tpu_custom_call.1']
    #allocation4 [shape = 's32[2]{0}', space=sflag, size = 0x8, scoped, tag = 'scoped memory for tpu_custom_call.1']
    #allocation5 [shape = 'u8[4096]{0}', space=vmem, size = 0x1000, scoped, tag = 'output window, operand 0, single buffered']
    %6 = vsyncpa [#allocation3], 0
    %7 = vsyncpa [#allocation4], 0
    loop: start=0, step=1, limit=4
    $region2: #{tpu_custom_call.1} parent=1 // loop_pre_header
      _
    $region3: #{tpu_custom_call.1} parent=1 // loop_header
      %s9 = sphi 0, %s13
      %p10 = scmp.ge.s32.totalorder %s9, 4
      %s17 = sphi 0, %s17
      %s19 = sphi 0, %s17
      %s20 = sphi 0, %s19
      %s34 = sphi 0, %s20
      %s38 = sphi 0, %s38
      %s40 = sphi 0, %s38
      %s41 = sphi 0, %s40
      %s55 = sphi 0, %s41
    $region4: #{tpu_custom_call.1} parent=1 // loop_header_branch
      %12 = sbr.rel (%p10) target = $region8
    $region5: #{tpu_custom_call.1} parent=1 // loop_body
      %s14 = ssub.s32 %s9, 1
      %s15 = ssub.s32 %s9, 2
      %s16 = sadd.s32 %s9, 1
      %s18 = sadd.s32 %s17, 1
      %p21 = scmp.eq.s32.totalorder %s9, 1
      %p22 = scmp.ne.s32.totalorder %s17, %s19
      %p23 = scmp.eq.s32.totalorder %s9, 0
      %p24 = por %p22, %p23
      %p25 = scmp.ne.s32.totalorder %s17, %s19
      %p26 = scmp.eq.s32.totalorder %s14, 1
      %p27 = por %p25, %p26
      %p28 = scmp.ne.s32.totalorder %s19, %s20
      %p29 = scmp.eq.s32.totalorder %s14, 0
      %p30 = por %p28, %p29
      %p31 = scmp.ne.s32.totalorder %s19, %s20
      %p32 = scmp.eq.s32.totalorder %s15, 1
      %p33 = por %p31, %p32
      %p35 = scmp.ne.s32.totalorder %s20, %s34
      %p36 = scmp.eq.s32.totalorder %s15, 0
      %p37 = por %p35, %p36
      %s39 = sadd.s32 %s38, 1
      %p42 = scmp.eq.s32.totalorder %s9, 1
      %p43 = scmp.ne.s32.totalorder %s38, %s40
      %p44 = scmp.eq.s32.totalorder %s9, 0
      %p45 = por %p43, %p44
      %p46 = scmp.ne.s32.totalorder %s38, %s40
      %p47 = scmp.eq.s32.totalorder %s14, 1
      %p48 = por %p46, %p47
      %p49 = scmp.ne.s32.totalorder %s40, %s41
      %p50 = scmp.eq.s32.totalorder %s14, 0
      %p51 = por %p49, %p50
      %p52 = scmp.ne.s32.totalorder %s40, %s41
      %p53 = scmp.eq.s32.totalorder %s15, 1
      %p54 = por %p52, %p53
      %p56 = scmp.ne.s32.totalorder %s41, %s55
      %p57 = scmp.eq.s32.totalorder %s15, 0
      %p58 = por %p56, %p57
      %p59 = scmp.le.s32.totalorder 1, %s9
      %p60 = scmp.lt.s32.totalorder %s9, 3
      %p61 = pnand %p59, %p60
      %p62 = pneg %p61
      // Predicated region
      $region9: #{tpu_custom_call.1} parent=5 // pred_check
        _
      $region10: #{tpu_custom_call.1} parent=5 // pred_check_branch
        %64 = sbr.rel (%p61) target = $region12
      $region11: #{tpu_custom_call.1} parent=5 // pred_region
        %s65 = ssub.s32 %s9, 1
        // Predicated region
        $region13: #{tpu_custom_call.1} parent=11 // pred_check
          %p66 = pneg %p30
        $region14: #{tpu_custom_call.1} parent=11 // pred_check_branch
          %68 = sbr.rel (%p66) target = $region16
        $region15: #{tpu_custom_call.1} parent=11 // pred_region
          %70 = vsyncadd [#allocation3], 0
          %s72 = sshll.u32 %s0, 4
          %s73 = int_to_ptr.hbm [resolvable:$true] %s72
          %s74 = sshll.u32 [#allocation2], 4
          %s75 = int_to_ptr.vmem [resolvable:$true] %s74
          %77 = dma.hbm_to_vmem [thread:$0]  %s73, 128, %s75, [#allocation3]
        $region16: #{tpu_custom_call.1} parent=11 // pred_fallthru
          _
      $region12: #{tpu_custom_call.1} parent=5 // pred_fallthru
        _
      %p78 = scmp.lt.s32.totalorder %s9, 2
      // Predicated region
      $region17: #{tpu_custom_call.1} parent=5 // pred_check
        %p79 = pneg %p78
      $region18: #{tpu_custom_call.1} parent=5 // pred_check_branch
        %81 = sbr.rel (%p79) target = $region20
      $region19: #{tpu_custom_call.1} parent=5 // pred_region
        _
      $region20: #{tpu_custom_call.1} parent=5 // pred_fallthru
        _
      %p82 = scmp.le.s32.totalorder 1, %s9
      %p83 = scmp.lt.s32.totalorder %s9, 3
      %p84 = pnand %p82, %p83
      %p85 = pneg %p84
      // Predicated region
      $region21: #{tpu_custom_call.1} parent=5 // pred_check
        _
      $region22: #{tpu_custom_call.1} parent=5 // pred_check_branch
        %87 = sbr.rel (%p84) target = $region24
      $region23: #{tpu_custom_call.1} parent=5 // pred_region
        %s88 = ssub.s32 %s9, 1
        // Predicated region
        $region25: #{tpu_custom_call.1} parent=23 // pred_check
          %p89 = pneg %p30
        $region26: #{tpu_custom_call.1} parent=23 // pred_check_branch
          %91 = sbr.rel (%p89) target = $region28
        $region27: #{tpu_custom_call.1} parent=23 // pred_region
          %93 = dma.done [#allocation3], 128
        $region28: #{tpu_custom_call.1} parent=23 // pred_fallthru
          _
        %p94 = pneg %p30
        %p95 = pneg %p27
        %p96 = pneg %p51
        %p97 = pneg %p48
        %v98 = vld [vmem:[#allocation2] sm:$0xff]
        %v99 = vadd.f32 %v98, 1.0
        %100 = vst [vmem:[#allocation5] sm:$0xff] %v99
        // Predicated region
        $region29: #{tpu_custom_call.1} parent=23 // pred_check
          %p101 = pneg %p48
        $region30: #{tpu_custom_call.1} parent=23 // pred_check_branch
          %103 = sbr.rel (%p101) target = $region32
        $region31: #{tpu_custom_call.1} parent=23 // pred_region
          %105 = vsyncadd [#allocation4], 0
          %s107 = sshll.u32 [#allocation5], 4
          %s108 = int_to_ptr.vmem [resolvable:$true] %s107
          %s109 = sshll.u32 %s1, 4
          %s110 = int_to_ptr.hbm [resolvable:$true] %s109
          %112 = dma.vmem_to_hbm [thread:$0]  %s108, 128, %s110, [#allocation4]
        $region32: #{tpu_custom_call.1} parent=23 // pred_fallthru
          _
        // Predicated region
        $region33: #{tpu_custom_call.1} parent=23 // pred_check
          %p113 = pneg %p48
        $region34: #{tpu_custom_call.1} parent=23 // pred_check_branch
          %115 = sbr.rel (%p113) target = $region36
        $region35: #{tpu_custom_call.1} parent=23 // pred_region
          %117 = dma.done [#allocation4], 128
        $region36: #{tpu_custom_call.1} parent=23 // pred_fallthru
          _
      $region24: #{tpu_custom_call.1} parent=5 // pred_fallthru
        _
      %p118 = scmp.le.s32.totalorder 2, %s9
      // Predicated region
      $region37: #{tpu_custom_call.1} parent=5 // pred_check
        %p119 = pneg %p118
      $region38: #{tpu_custom_call.1} parent=5 // pred_check_branch
        %121 = sbr.rel (%p119) target = $region40
      $region39: #{tpu_custom_call.1} parent=5 // pred_region
        %s122 = ssub.s32 %s9, 2
      $region40: #{tpu_custom_call.1} parent=5 // pred_fallthru
        _
    $region6: #{tpu_custom_call.1} parent=1 // loop_footer
      %s13 = sadd.s32 1, %s9
    $region7: #{tpu_custom_call.1} parent=1 // loop_footer_branch
      %8 = sbr.rel target = $region3
    $region8: #{tpu_custom_call.1} parent=1 // loop_exit
      _
    %123 = vsyncpa [#allocation3], 1
    %s124 = scalar_lea.sflag [#allocation3], 1
    %125 = vsyncpa %s124, 1
    %126 = vsyncpa [#allocation4], 1
    %s127 = scalar_lea.sflag [#allocation4], 1
    %128 = vsyncpa %s127, 1

// kernel: tpu_custom_call.1
$region0: #{tpu_custom_call.1}
  #allocation0 [shape = 'u32[]', space=smem, size = 0x4, offset = 0x4, fixed_abs, tag = 'smem constant byte address 0x4 - core index']
  #allocation1 [shape = 'u32[72,128]{1,0:T(1,128)}', space=vmem, size = 0x9000, scoped, tag = 'internal scratch']
  %s0 = inlined_call_operand.vmem [shape: f32[16,32], index: 0, kind: input, shape index: {}]
  %s1 = inlined_call_operand.vmem [shape: f32[1,32], index: 1, kind: input, shape index: {}]
  %s2 = inlined_call_operand.vmem [shape: f32[1,32], index: 2, kind: input, shape index: {}]
  %s3 = inlined_call_operand.vmem [shape: bf16[32,64], index: 3, kind: input, shape index: {}]
  %s4 = inlined_call_operand.vmem [shape: f32[1,64], index: 4, kind: input, shape index: {}]
  %s5 = inlined_call_operand.vmem [shape: bf16[64,32], index: 5, kind: input, shape index: {}]
  %s6 = inlined_call_operand.vmem [shape: f32[1,32], index: 6, kind: input, shape index: {}]
  %s7 = inlined_call_operand.hbm [shape: f32[16,32], index: 7, kind: output, shape index: {}]
  %s8 = sld [smem:[#allocation0]]
  $region38: #{tpu_custom_call.1} parent=0
    _
  %s10 = ssub.s32 1, %s8
  %s11 = scalar_select 0, %s10, %s8
  $region1: #{tpu_custom_call.1} parent=0
    #allocation2 [shape = 'u8[8192]{0}', space=vmem, size = 0x2000, scoped, tag = 'output window, operand 0, single buffered']
    #allocation3 [shape = 's32[1]{0}', space=sflag, size = 0x4, scoped, tag = 'scoped memory for tpu_custom_call.1']
    %12 = vsyncpa [#allocation3], 0
    // Predicated region
    $region2: #{tpu_custom_call.1} parent=1 // pred_check
      _
    $region3: #{tpu_custom_call.1} parent=1 // pred_check_branch
      %14 = sbr.rel (0) target = $region5
    $region4: #{tpu_custom_call.1} parent=1 // pred_region
      _
    $region5: #{tpu_custom_call.1} parent=1 // pred_fallthru
      _
    // Predicated region
    $region6: #{tpu_custom_call.1} parent=1 // pred_check
      _
    $region7: #{tpu_custom_call.1} parent=1 // pred_check_branch
      %16 = sbr.rel (0) target = $region9
    $region8: #{tpu_custom_call.1} parent=1 // pred_region
      _
    $region9: #{tpu_custom_call.1} parent=1 // pred_fallthru
      _
    // Predicated region
    $region10: #{tpu_custom_call.1} parent=1 // pred_check
      _
    $region11: #{tpu_custom_call.1} parent=1 // pred_check_branch
      %18 = sbr.rel (0) target = $region13
    $region12: #{tpu_custom_call.1} parent=1 // pred_region
      _
    $region13: #{tpu_custom_call.1} parent=1 // pred_fallthru
      _
    // Predicated region
    $region14: #{tpu_custom_call.1} parent=1 // pred_check
      _
    $region15: #{tpu_custom_call.1} parent=1 // pred_check_branch
      %20 = sbr.rel (0) target = $region17
    $region16: #{tpu_custom_call.1} parent=1 // pred_region
      _
    $region17: #{tpu_custom_call.1} parent=1 // pred_fallthru
      _
    // Predicated region
    $region18: #{tpu_custom_call.1} parent=1 // pred_check
      _
    $region19: #{tpu_custom_call.1} parent=1 // pred_check_branch
      %22 = sbr.rel (0) target = $region21
    $region20: #{tpu_custom_call.1} parent=1 // pred_region
      _
    $region21: #{tpu_custom_call.1} parent=1 // pred_fallthru
      _
    // Predicated region
    $region22: #{tpu_custom_call.1} parent=1 // pred_check
      _
    $region23: #{tpu_custom_call.1} parent=1 // pred_check_branch
      %24 = sbr.rel (0) target = $region25
    $region24: #{tpu_custom_call.1} parent=1 // pred_region
      _
    $region25: #{tpu_custom_call.1} parent=1 // pred_fallthru
      _
    // Predicated region
    $region26: #{tpu_custom_call.1} parent=1 // pred_check
      _
    $region27: #{tpu_custom_call.1} parent=1 // pred_check_branch
      %26 = sbr.rel (0) target = $region29
    $region28: #{tpu_custom_call.1} parent=1 // pred_region
      _
    $region29: #{tpu_custom_call.1} parent=1 // pred_fallthru
      _
    %v28 = vld [vmem:[%s0] sm:$0xff]
    %v29 = vld [vmem:[%s0 + $0x8] sm:$0xff]
    %v30 = vld [vmem:[%s1] sm:$0x1]
    %v31 = vld [vmem:[%s2] sm:$0x1]
    %vm32 = vcmask 261120
    %v33 = vsel %vm32, %v28, 0.0
    %34 = vadd.xlane.f32.xlu0 %v33
    %v35 = vpop.xlane.xlu0 %34
    %v36 = vsel %vm32, %v29, 0.0
    %37 = vadd.xlane.f32.xlu0 %v36
    %v38 = vpop.xlane.xlu0 %37
    %v39 = vrcp.pop 32.0
    %v40 = vmul.f32 32.0, %v39
    %v41 = vsub.f32 1.0, %v40
    %v42 = vmul.f32 %v39, %v41
    %v43 = vadd.f32 %v39, %v42
    %vm44 = vweird.f32 %v39
    %v45 = vsel %vm44, %v39, %v43
    %v46 = vmul.f32 %v35, %v45
    %v47 = vmul.f32 %v38, %v45
    %v48 = vsub.f32 %v28, %v46
    %v49 = vsub.f32 %v29, %v47
    %v50 = vmul.f32 %v48, %v48
    %v51 = vmul.f32 %v49, %v49
    %v52 = vsel %vm32, %v50, 0.0
    %53 = vadd.xlane.f32.xlu0 %v52
    %v54 = vpop.xlane.xlu0 %53
    %v55 = vsel %vm32, %v51, 0.0
    %56 = vadd.xlane.f32.xlu0 %v55
    %v57 = vpop.xlane.xlu0 %56
    %v58 = vmul.f32 %v54, %v45
    %v59 = vmul.f32 %v57, %v45
    %v60 = vadd.f32 %v58, 1e-05
    %v61 = vadd.f32 %v59, 1e-05
    %v62 = vrsqrt.pop %v60
    %v63 = vmul.f32 %v62, %v60
    %v64 = vmul.f32 %v63, %v62
    %v65 = vmul.f32 0.5, %v64
    %v66 = vsub.f32 1.5, %v65
    %v67 = vmul.f32 %v62, %v66
    %vm68 = vweird.f32 %v60
    %vm69 = vweird.f32 %v62
    %vm70 = vmor %vm68, %vm69
    %v71 = vsel %vm70, %v62, %v67
    %v72 = vrsqrt.pop %v61
    %v73 = vmul.f32 %v72, %v61
    %v74 = vmul.f32 %v73, %v72
    %v75 = vmul.f32 0.5, %v74
    %v76 = vsub.f32 1.5, %v75
    %v77 = vmul.f32 %v72, %v76
    %vm78 = vweird.f32 %v61
    %vm79 = vweird.f32 %v72
    %vm80 = vmor %vm78, %vm79
    %v81 = vsel %vm80, %v72, %v77
    %v82 = vmul.f32 %v48, %v71
    %v83 = vmul.f32 %v49, %v81
    %v85 = vperm.slane %v30, 0
    %v87 = vmul.f32 %v82, %v85
    %v88 = vmul.f32 %v83, %v85
    %v90 = vperm.slane %v31, 0
    %v92 = vadd.f32 %v87, %v90
    %v93 = vadd.f32 %v88, %v90
    %v94 = vpack.c.bf16 %v93, %v92
    %v95 = vld [vmem:[%s3] sm:$0xf]
    %v96 = vld [vmem:[%s3 + $0x4] sm:$0xf]
    %v97 = vld [vmem:[%s3 + $0x8] sm:$0xf]
    %v98 = vld [vmem:[%s3 + $0xc] sm:$0xf]
    %v99 = vld [vmem:[%s4] sm:$0x1]
    %v101 = vperm.slane %v99, 0
    %v107 = vunpack.c.l.b16 %v95
    %v108 = vunpack.c.l.b16 %v96
    %v109 = vunpack.c.l.b16 %v97
    %v110 = vunpack.c.l.b16 %v98
    %v111 = vpack.c.b16 %v108, %v107
    %v112 = vpack.c.b16 %v110, %v109
    %v116 = vsel %vm32, %v94, 0
    %118 = vmatpush.bf16.msra.mxu0 0
    %119 = vmatpush.bf16.msra.mxu0 0
    %120 = vmatpush.bf16.msra.mxu0 0
    %121 = vmatpush.bf16.msra.mxu0 0
    %122 = vmatpush.bf16.msra.mxu0 0
    %123 = vmatpush.bf16.msra.mxu0 0
    %124 = vmatpush.bf16.msra.mxu0 %v112
    %125 = vmatpush.bf16.msra.mxu0 %v111
    %126 = vmatmul.bf16.gmra.mxu0 %v116
    %v127 = vpop.f32.mrf.mxu0
    %v128 = vadd.f32 %v101, %v127
    %v129 = vpop.f32.mrf.mxu0
    %v130 = vadd.f32 %v101, %v129
    %131 = vdwg.mxu0
    %v132 = vmax.f32 %v128, 0.0
    %v133 = vmax.f32 %v130, 0.0
    %v134 = vpack.c.bf16 %v133, %v132
    %v135 = vld [vmem:[%s5] sm:$0xf]
    %v136 = vld [vmem:[%s5 + $0x4] sm:$0xf]
    %v137 = vld [vmem:[%s5 + $0x8] sm:$0xf]
    %v138 = vld [vmem:[%s5 + $0xc] sm:$0xf]
    %v139 = vld [vmem:[%s5 + $0x10] sm:$0xf]
    %v140 = vld [vmem:[%s5 + $0x14] sm:$0xf]
    %v141 = vld [vmem:[%s5 + $0x18] sm:$0xf]
    %v142 = vld [vmem:[%s5 + $0x1c] sm:$0xf]
    %v143 = vld [vmem:[%s6] sm:$0x1]
    %v145 = vperm.slane %v143, 0
    %v155 = vunpack.c.l.b16 %v135
    %v156 = vunpack.c.l.b16 %v136
    %v157 = vunpack.c.l.b16 %v137
    %v158 = vunpack.c.l.b16 %v138
    %v159 = vunpack.c.l.b16 %v139
    %v160 = vunpack.c.l.b16 %v140
    %v161 = vunpack.c.l.b16 %v141
    %v162 = vunpack.c.l.b16 %v142
    %v163 = vpack.c.b16 %v156, %v155
    %v164 = vpack.c.b16 %v158, %v157
    %v165 = vpack.c.b16 %v160, %v159
    %v166 = vpack.c.b16 %v162, %v161
    %vm171 = vcmask 523264
    %v173 = vsel %vm171, %v134, 0
    %175 = vmatpush.bf16.msra.mxu0 0
    %176 = vmatpush.bf16.msra.mxu0 0
    %177 = vmatpush.bf16.msra.mxu0 0
    %178 = vmatpush.bf16.msra.mxu0 0
    %179 = vmatpush.bf16.msra.mxu0 %v166
    %180 = vmatpush.bf16.msra.mxu0 %v165
    %181 = vmatpush.bf16.msra.mxu0 %v164
    %182 = vmatpush.bf16.msra.mxu0 %v163
    %183 = vmatmul.bf16.gmra.mxu0 %v173
    %v184 = vpop.f32.mrf.mxu0
    %v185 = vadd.f32 %v145, %v184
    %v186 = vpop.f32.mrf.mxu0
    %v187 = vadd.f32 %v145, %v186
    %188 = vdwg.mxu0
    %v189 = vmul.f32 %v185, 0.5
    %v190 = vmul.f32 %v187, 0.5
    %v191 = vadd.f32 %v28, %v189
    %v192 = vadd.f32 %v29, %v190
    %193 = vst.msk [vmem:[#allocation2] sm:$0xff] %vm32, %v191
    %194 = vst.msk [vmem:[#allocation2 + $0x8] sm:$0xff] %vm32, %v192
    // Predicated region
    $region30: #{tpu_custom_call.1} parent=1 // pred_check
      _
    $region31: #{tpu_custom_call.1} parent=1 // pred_check_branch
      %196 = sbr.rel (0) target = $region33
    $region32: #{tpu_custom_call.1} parent=1 // pred_region
      %198 = vsyncadd [#allocation3], 0
      %s199 = sshll.u32 [#allocation2], 4
      %s200 = int_to_ptr.vmem [resolvable:$true] %s199
      %s201 = sshll.u32 %s7, 4
      %s202 = int_to_ptr.hbm [resolvable:$true] %s201
      %207 = dma.vmem_to_hbm [thread:$0]  %s200, 256, %s202, [#allocation3], 128, 128, 8
    $region33: #{tpu_custom_call.1} parent=1 // pred_fallthru
      _
    // Predicated region
    $region34: #{tpu_custom_call.1} parent=1 // pred_check
      _
    $region35: #{tpu_custom_call.1} parent=1 // pred_check_branch
      %209 = sbr.rel (0) target = $region37
    $region36: #{tpu_custom_call.1} parent=1 // pred_region
      %211 = dma.done [#allocation3], 256
    $region37: #{tpu_custom_call.1} parent=1 // pred_fallthru
      _
    %212 = vsyncpa [#allocation3], 1

</llo_original>
